<compile_context>
chip_gen: v5e
topology: v5e:2x2
jax: 0.10.0
libtpu: 0.0.40
codegen_flags: <defaults>
</compile_context>

<pallas_src>
import functools

import jax
import jax.numpy as jnp
from jax.experimental import pallas as pl
from jax.experimental.pallas import tpu as pltpu

_MIB = 1024 * 1024


# ---------------------------------------------------------------------------
# small helpers
# ---------------------------------------------------------------------------
def _roundup(x, m):
    return -(-x // m) * m


def _padded_block_bytes(block_shape, dtype):
    """VMEM footprint of one block: last dim pads to 128 lanes, second-to-last
    to the dtype's sublane multiple (8 for f32, 16 for bf16, 32 for int8)."""
    itemsize = jnp.dtype(dtype).itemsize
    sub = 8 * max(1, 4 // itemsize)
    dims = list(block_shape)
    dims[-1] = _roundup(dims[-1], 128)
    if len(dims) >= 2:
        dims[-2] = _roundup(dims[-2], sub)
    n = 1
    for d in dims:
        n *= int(d)
    return n * itemsize


def _device_kind():
    try:
        return jax.devices()[0].device_kind.lower()
    except Exception:
        return ""


def _core_parallel():
    return getattr(pltpu, "CORE_PARALLEL", "parallel")


def _policy():
    """Generation-aware block / VMEM budgets (bytes)."""
    kind = _device_kind()
    if "v7" in kind:
        # 64 MiB VMEM, ~3.2 TB/s HBM: bigger streaming tiles, tighter VMEM cap.
        pol = dict(is_v7=True, fused_block=8 * _MIB, stream_block=6 * _MIB,
                   vmem_cap=48 * _MIB)
    elif "v6" in kind:
        pol = dict(is_v7=False, fused_block=16 * _MIB, stream_block=4 * _MIB,
                   vmem_cap=96 * _MIB)
    elif "v5" in kind:
        pol = dict(is_v7=False, fused_block=16 * _MIB, stream_block=2 * _MIB,
                   vmem_cap=96 * _MIB)
    else:
        pol = dict(is_v7=False, fused_block=8 * _MIB, stream_block=2 * _MIB,
                   vmem_cap=48 * _MIB)
    try:  # refine the cap from the actual part when the query is available
        cap = int(pltpu.get_tpu_info().vmem_capacity_bytes)
        pol["vmem_cap"] = max(16 * _MIB, min(pol["vmem_cap"], (3 * cap) // 4))
    except Exception:
        pass
    return pol


def _vmem_limit(live_bytes, cap):
    return int(min(cap, max(16 * _MIB, int(live_bytes) + 4 * _MIB)))


# ---------------------------------------------------------------------------
# shared fc1 -> relu -> fc2 -> sigmoid on the summed pooled stats (avg + max)
# ---------------------------------------------------------------------------
def _fc_scale(pooled, w1, b1, w2, b2):
    """pooled: (Bb, C) f32 = avg_pool + max_pool. Returns sigmoid gate (Bb, C)."""
    C = pooled.shape[-1]
    Cr = w1.shape[0]
    if max(C, Cr) >= 512:
        # Large channel counts: use the otherwise-idle MXU so we never build
        # the (Bb, Cr, C) broadcast temporary.
        h = jax.lax.dot_general(pooled, w1, (((1,), (1,)), ((), ())),
                                preferred_element_type=jnp.float32) + 2.0 * b1
        h = jnp.maximum(h, 0.0)
        s = jax.lax.dot_general(h, w2, (((1,), (1,)), ((), ())),
                                preferred_element_type=jnp.float32) + b2
    else:
        # Tiny contraction: broadcast-multiply + lane reduce on the VPU/XLU
        # (an MXU matmul of width Cr would be pure latency).
        h = jnp.sum(pooled[:, None, :] * w1[None, :, :], axis=-1) + 2.0 * b1
        h = jnp.maximum(h, 0.0)
        s = jnp.sum(h[:, None, :] * w2[None, :, :], axis=-1) + b2
    return jax.nn.sigmoid(s)


# ---------------------------------------------------------------------------
# Path 1: fused single-pass kernel over (Bb, C, HW) batch blocks
# ---------------------------------------------------------------------------
def _fused_kernel(x_ref, w1_ref, b1_ref, w2_ref, b2_ref, o_ref):
    x = x_ref[...]                                     # (Bb, C, HW)
    xf = x.astype(jnp.float32)                         # no-op for f32 input
    pooled = jnp.mean(xf, axis=-1) + jnp.max(xf, axis=-1)        # (Bb, C)
    s = _fc_scale(pooled, w1_ref[...], b1_ref[...], w2_ref[...], b2_ref[...])
    o_ref[...] = (x * s[:, :, None].astype(x.dtype)).astype(o_ref.dtype)


# ---------------------------------------------------------------------------
# Path 2a: stats kernel — accumulate sum/max over HW tiles, emit sigmoid gate
# ---------------------------------------------------------------------------
def _stats_scale_kernel(x_ref, w1_ref, b1_ref, w2_ref, b2_ref, s_ref,
                        sum_acc, max_acc, *, inv_hw, rem):
    t = pl.program_id(1)
    nt = pl.num_programs(1)

    @pl.when(t == 0)
    def _():
        sum_acc[...] = jnp.zeros_like(sum_acc)
        max_acc[...] = jnp.full_like(max_acc, -jnp.inf)

    x = x_ref[...].astype(jnp.float32)                 # (1, C, T)

    if rem == 0:
        # Every tile is fully inside HW: no mask work at all.
        sum_acc[...] += jnp.sum(x, axis=-1)
        max_acc[...] = jnp.maximum(max_acc[...], jnp.max(x, axis=-1))
    else:
        @pl.when(t != nt - 1)
        def _():                                        # interior tiles: unmasked
            sum_acc[...] += jnp.sum(x, axis=-1)
            max_acc[...] = jnp.maximum(max_acc[...], jnp.max(x, axis=-1))

        @pl.when(t == nt - 1)
        def _():                                        # ragged last tile: mask
            lane = jax.lax.broadcasted_iota(jnp.int32, (1, 1, x.shape[-1]), 2)
            valid = lane < rem
            sum_acc[...] += jnp.sum(jnp.where(valid, x, 0.0), axis=-1)
            max_acc[...] = jnp.maximum(
                max_acc[...],
                jnp.max(jnp.where(valid, x, -jnp.inf), axis=-1))

    @pl.when(t == nt - 1)
    def _():
        pooled = sum_acc[...] * inv_hw + max_acc[...]   # (1, C): avg + max
        s_ref[...] = _fc_scale(pooled, w1_ref[...], b1_ref[...],
                               w2_ref[...], b2_ref[...])


# ---------------------------------------------------------------------------
# Path 2b: gate kernel — re-stream x and apply the precomputed gate
# ---------------------------------------------------------------------------
def _gate_kernel(x_ref, s_ref, o_ref):
    x = x_ref[...]                                     # (1, C, T)
    s = s_ref[...].astype(x.dtype)                     # (1, C) lane-dense
    o_ref[...] = (x * s[:, :, None]).astype(o_ref.dtype)


# ---------------------------------------------------------------------------
# public wrapper
# ---------------------------------------------------------------------------
def channel_attention(x_nchw, w1, b1, w2, b2, *, max_block_bytes=None):
    """SE-style channel attention. x_nchw: (B, C, H, W). Returns same shape."""
    B, C, H, W = x_nchw.shape
    HW = H * W
    dtype = x_nchw.dtype
    itemsize = jnp.dtype(dtype).itemsize

    # Accept conv-style (Cr, C, 1, 1) / (C, Cr, 1, 1) weights as well.
    w1 = jnp.asarray(w1).reshape(w1.shape[0], -1)      # (Cr, C)
    w2 = jnp.asarray(w2).reshape(w2.shape[0], -1)      # (C, Cr)
    Cr = w1.shape[0]

    pol = _policy()
    fused_budget = max_block_bytes if max_block_bytes is not None else pol["fused_block"]
    stream_budget = max_block_bytes if max_block_bytes is not None else pol["stream_block"]
    vmem_cap = pol["vmem_cap"]
    is_v7 = pol["is_v7"]
    cp = _core_parallel()

    x = x_nchw.reshape(B, C, HW)
    w1f = w1.astype(jnp.float32)
    w2f = w2.astype(jnp.float32)
    b1r = jnp.asarray(b1).reshape(1, Cr).astype(jnp.float32)
    b2r = jnp.asarray(b2).reshape(1, C).astype(jnp.float32)

    param_specs = [
        pl.BlockSpec((Cr, C), lambda *_: (0, 0)),      # w1
        pl.BlockSpec((1, Cr), lambda *_: (0, 0)),      # b1
        pl.BlockSpec((C, Cr), lambda *_: (0, 0)),      # w2
        pl.BlockSpec((1, C), lambda *_: (0, 0)),       # b2
    ]
    param_bytes = sum(_padded_block_bytes(s, jnp.float32)
                      for s in [(Cr, C), (1, Cr), (C, Cr), (1, C)])

    # Padding-aware per-image footprint (C -> sublane multiple, HW -> 128 lanes).
    per_image_padded = _padded_block_bytes((C, HW), dtype)

    if per_image_padded <= fused_budget:
        # ------------- single pass: read x once, write once -------------
        Bb = min(B, max(1, fused_budget // per_image_padded))
        while B % Bb != 0:            # exact batch blocks, no ragged tail
            Bb -= 1
        n_blocks = B // Bb
        # double-buffered in + out blocks + f32 pooling temp + resident params
        live = (4 * Bb * per_image_padded
                + Bb * _padded_block_bytes((C, HW), jnp.float32)
                + 2 * param_bytes)
        sem = (cp,) if (is_v7 and n_blocks >= 2) else ("parallel",)
        cost = pl.CostEstimate(
            flops=int(4 * B * C * HW + 4 * B * C * Cr),
            transcendentals=int(B * C),
            bytes_accessed=int(2 * B * C * HW * itemsize))
        out = pl.pallas_call(
            _fused_kernel,
            out_shape=jax.ShapeDtypeStruct((B, C, HW), dtype),
            grid=(n_blocks,),
            in_specs=[pl.BlockSpec((Bb, C, HW), lambda b: (b, 0, 0))] + param_specs,
            out_specs=pl.BlockSpec((Bb, C, HW), lambda b: (b, 0, 0)),
            compiler_params=pltpu.CompilerParams(
                dimension_semantics=sem,
                vmem_limit_bytes=_vmem_limit(live, vmem_cap)),
            cost_estimate=cost,
        )(x, w1f, b1r, w2f, b2r)
        return out.reshape(B, C, H, W)

    # ------------- two-pass: stats + gate over 128-aligned HW tiles -------------
    sub = 8 * max(1, 4 // itemsize)
    C_pad = _roundup(C, sub)
    T = (stream_budget // max(1, C_pad * itemsize)) // 128 * 128
    T = max(128, min(T, _roundup(HW, 128)))
    n_t = -(-HW // T)
    rem = HW % T
    x_tile_padded = _padded_block_bytes((1, C, T), dtype)

    # Pass 1: pooled stats -> sigmoid gate, handed off as lane-dense (B, C).
    stats_sem = (cp if (is_v7 and B >= 2) else "parallel", "arbitrary")
    stats_live = (2 * x_tile_padded + 2 * param_bytes
                  + 4 * _padded_block_bytes((1, C), jnp.float32))
    stats_cost = pl.CostEstimate(
        flops=int(3 * B * C * HW + 4 * B * C * Cr),
        transcendentals=int(B * C),
        bytes_accessed=int(B * C * HW * itemsize + B * C * 4))
    scale = pl.pallas_call(
        functools.partial(_stats_scale_kernel, inv_hw=1.0 / HW, rem=rem),
        out_shape=jax.ShapeDtypeStruct((B, C), jnp.float32),
        grid=(B, n_t),
        in_specs=[pl.BlockSpec((1, C, T), lambda b, t: (b, 0, t))] + param_specs,
        out_specs=pl.BlockSpec((1, C), lambda b, t: (b, 0)),
        scratch_shapes=[pltpu.VMEM((1, C), jnp.float32),    # sum accumulator
                        pltpu.VMEM((1, C), jnp.float32)],   # max accumulator
        compiler_params=pltpu.CompilerParams(
            dimension_semantics=stats_sem,
            vmem_limit_bytes=_vmem_limit(stats_live, vmem_cap)),
        cost_estimate=stats_cost,
    )(x, w1f, b1r, w2f, b2r)

    # Pass 2: re-stream x and apply the gate (pure elementwise).
    if is_v7 and B >= 2:
        gate_sem = (cp, "parallel")
    elif is_v7 and n_t >= 2:
        gate_sem = ("parallel", cp)    # B == 1: split HW tiles across the 2 TCs
    else:
        gate_sem = ("parallel", "parallel")
    gate_live = 4 * x_tile_padded + 2 * _padded_block_bytes((1, C), jnp.float32)
    gate_cost = pl.CostEstimate(
        flops=int(B * C * HW), transcendentals=0,
        bytes_accessed=int(2 * B * C * HW * itemsize + B * C * 4))
    out = pl.pallas_call(
        _gate_kernel,
        out_shape=jax.ShapeDtypeStruct((B, C, HW), dtype),
        grid=(B, n_t),
        in_specs=[pl.BlockSpec((1, C, T), lambda b, t: (b, 0, t)),
                  pl.BlockSpec((1, C), lambda b, t: (b, 0))],
        out_specs=pl.BlockSpec((1, C, T), lambda b, t: (b, 0, t)),
        compiler_params=pltpu.CompilerParams(
            dimension_semantics=gate_sem,
            vmem_limit_bytes=_vmem_limit(gate_live, vmem_cap)),
        cost_estimate=gate_cost,
    )(x, scale)
    return out.reshape(B, C, H, W)


# ---------------------------------------------------------------------------
# pure-JAX reference mirroring the PyTorch forward
# ---------------------------------------------------------------------------
def reference_channel_attention(x, w1, b1, w2, b2):
    avg = jnp.mean(x, axis=(2, 3), keepdims=True)
    mx = jnp.max(jnp.max(x, axis=2, keepdims=True), axis=3, keepdims=True)

    def fc(w, b, v):  # 1x1 conv == per-pixel matmul over channels
        return jnp.einsum('oc,bcij->boij', w, v) + b[None, :, None, None]

    scale = fc(w1, b1, avg) + fc(w1, b1, mx)
    scale = fc(w2, b2, jnp.maximum(scale, 0.0))
    return jax.nn.sigmoid(scale) * x


if __name__ == "__main__":
    key = jax.random.PRNGKey(0)
    ks = jax.random.split(key, 10)

    # --- Test 1: fused single-pass path (small feature map, batch-blocked) ---
    B, C, H, W = 2, 32, 16, 16
    reduction = 16
    Cr = C // reduction

    x = jax.random.normal(ks[0], (B, C, H, W), dtype=jnp.float32)
    w1 = 0.1 * jax.random.normal(ks[1], (Cr, C), dtype=jnp.float32)   # fc1.weight (Cr,C,1,1) squeezed
    b1 = 0.1 * jax.random.normal(ks[2], (Cr,), dtype=jnp.float32)     # fc1.bias
    w2 = 0.1 * jax.random.normal(ks[3], (C, Cr), dtype=jnp.float32)   # fc2.weight (C,Cr,1,1) squeezed
    b2 = 0.1 * jax.random.normal(ks[4], (C,), dtype=jnp.float32)      # fc2.bias

    out = jax.block_until_ready(channel_attention(x, w1, b1, w2, b2))
    ref = reference_channel_attention(x, w1, b1, w2, b2)
    assert out.shape == (B, C, H, W)
    assert jnp.allclose(out, ref, atol=1e-5, rtol=1e-5), "fused path mismatch vs reference"

    # --- Test 2: two-pass HW-tiled path (forced via a tiny block budget; HW
    #     deliberately not a multiple of the 128-lane tile to exercise the
    #     ragged-last-tile masking and the lane-dense gate handoff) ---
    B2, C2, H2, W2 = 3, 16, 24, 40    # HW = 960
    reduction2 = 8
    Cr2 = C2 // reduction2

    x2 = jax.random.normal(ks[5], (B2, C2, H2, W2), dtype=jnp.float32)
    w1b = 0.1 * jax.random.normal(ks[6], (Cr2, C2), dtype=jnp.float32)
    b1b = 0.1 * jax.random.normal(ks[7], (Cr2,), dtype=jnp.float32)
    w2b = 0.1 * jax.random.normal(ks[8], (C2, Cr2), dtype=jnp.float32)
    b2b = 0.1 * jax.random.normal(ks[9], (C2,), dtype=jnp.float32)

    out2 = jax.block_until_ready(
        channel_attention(x2, w1b, b1b, w2b, b2b, max_block_bytes=16 * 1024))
    ref2 = reference_channel_attention(x2, w1b, b1b, w2b, b2b)
    assert out2.shape == (B2, C2, H2, W2)
    assert jnp.allclose(out2, ref2, atol=1e-5, rtol=1e-5), "two-pass path mismatch vs reference"

    print("KERNEL_OK")
</pallas_src>

<mosaic_0001>
module attributes {stable_mosaic.version = 11 : i64} {
  func.func @_fused_kernel(%arg0: i32, %arg1: memref<2x32x256xf32, #tpu.memory_space<vmem>>, %arg2: memref<2x32xf32, #tpu.memory_space<vmem>>, %arg3: memref<1x2xf32, #tpu.memory_space<vmem>>, %arg4: memref<32x2xf32, #tpu.memory_space<vmem>>, %arg5: memref<1x32xf32, #tpu.memory_space<vmem>>, %arg6: memref<2x32x256xf32, #tpu.memory_space<vmem>>) attributes {dimension_semantics = [#tpu.dimension_semantics<parallel>], iteration_bounds = array<i64: 1>, scalar_prefetch = 0 : i64, scratch_operands = 0 : i64, tpu.core_type = #tpu.core_type<tc>, window_params = [{transform_indices = @transform_0, window_bounds = array<i64: 2, 32, 256>}, {pipeline_mode = #tpu.pipeline_mode<synchronous>, transform_indices = @transform_1, window_bounds = array<i64: 2, 32>}, {pipeline_mode = #tpu.pipeline_mode<synchronous>, transform_indices = @transform_2, window_bounds = array<i64: 1, 2>}, {pipeline_mode = #tpu.pipeline_mode<synchronous>, transform_indices = @transform_3, window_bounds = array<i64: 32, 2>}, {pipeline_mode = #tpu.pipeline_mode<synchronous>, transform_indices = @transform_4, window_bounds = array<i64: 1, 32>}, {transform_indices = @transform_5, window_bounds = array<i64: 2, 32, 256>}]} {
    %c0 = arith.constant 0 : index
    %c0_0 = arith.constant 0 : index
    %c0_1 = arith.constant 0 : index
    %0 = vector.load %arg1[%c0, %c0_0, %c0_1] : memref<2x32x256xf32, #tpu.memory_space<vmem>>, vector<2x32x256xf32>
    %cst = arith.constant dense<0.000000e+00> : vector<2x32xf32>
    %1 = vector.multi_reduction <add>, %0, %cst [2] : vector<2x32x256xf32> to vector<2x32xf32>
    %cst_2 = arith.constant 2.560000e+02 : f32
    %2 = vector.broadcast %cst_2 : f32 to vector<2x32xf32>
    %3 = arith.divf %1, %2 : vector<2x32xf32>
    %cst_3 = arith.constant dense<0xFF800000> : vector<2x32xf32>
    %4 = vector.multi_reduction <maximumf>, %0, %cst_3 [2] : vector<2x32x256xf32> to vector<2x32xf32>
    %5 = arith.addf %3, %4 : vector<2x32xf32>
    %c0_4 = arith.constant 0 : index
    %c0_5 = arith.constant 0 : index
    %6 = vector.load %arg2[%c0_4, %c0_5] : memref<2x32xf32, #tpu.memory_space<vmem>>, vector<2x32xf32>
    %c0_6 = arith.constant 0 : index
    %c0_7 = arith.constant 0 : index
    %7 = vector.load %arg3[%c0_6, %c0_7] : memref<1x2xf32, #tpu.memory_space<vmem>>, vector<1x2xf32>
    %c0_8 = arith.constant 0 : index
    %c0_9 = arith.constant 0 : index
    %8 = vector.load %arg4[%c0_8, %c0_9] : memref<32x2xf32, #tpu.memory_space<vmem>>, vector<32x2xf32>
    %c0_10 = arith.constant 0 : index
    %c0_11 = arith.constant 0 : index
    %9 = vector.load %arg5[%c0_10, %c0_11] : memref<1x32xf32, #tpu.memory_space<vmem>>, vector<1x32xf32>
    %10 = vector.shape_cast %5 : vector<2x32xf32> to vector<2x1x32xf32>
    %11 = vector.shape_cast %6 : vector<2x32xf32> to vector<1x2x32xf32>
    %12 = vector.broadcast %10 : vector<2x1x32xf32> to vector<2x2x32xf32>
    %13 = vector.broadcast %11 : vector<1x2x32xf32> to vector<2x2x32xf32>
    %14 = arith.mulf %12, %13 : vector<2x2x32xf32>
    %cst_12 = arith.constant dense<0.000000e+00> : vector<2x2xf32>
    %15 = vector.multi_reduction <add>, %14, %cst_12 [2] : vector<2x2x32xf32> to vector<2x2xf32>
    %cst_13 = arith.constant 2.000000e+00 : f32
    %16 = vector.broadcast %cst_13 : f32 to vector<1x2xf32>
    %17 = arith.mulf %16, %7 : vector<1x2xf32>
    %18 = vector.broadcast %17 : vector<1x2xf32> to vector<2x2xf32>
    %19 = arith.addf %15, %18 : vector<2x2xf32>
    %cst_14 = arith.constant 0.000000e+00 : f32
    %20 = vector.broadcast %cst_14 : f32 to vector<2x2xf32>
    %21 = arith.maximumf %19, %20 : vector<2x2xf32>
    %22 = vector.shape_cast %21 : vector<2x2xf32> to vector<2x1x2xf32>
    %23 = vector.shape_cast %8 : vector<32x2xf32> to vector<1x32x2xf32>
    %24 = vector.broadcast %22 : vector<2x1x2xf32> to vector<2x32x2xf32>
    %25 = vector.broadcast %23 : vector<1x32x2xf32> to vector<2x32x2xf32>
    %26 = arith.mulf %24, %25 : vector<2x32x2xf32>
    %cst_15 = arith.constant dense<0.000000e+00> : vector<2x32xf32>
    %27 = vector.multi_reduction <add>, %26, %cst_15 [2] : vector<2x32x2xf32> to vector<2x32xf32>
    %28 = vector.broadcast %9 : vector<1x32xf32> to vector<2x32xf32>
    %29 = arith.addf %27, %28 : vector<2x32xf32>
    %30 = arith.negf %29 : vector<2x32xf32>
    %31 = math.exp %30 : vector<2x32xf32>
    %cst_16 = arith.constant 1.000000e+00 : f32
    %32 = vector.broadcast %cst_16 : f32 to vector<2x32xf32>
    %33 = arith.addf %32, %31 : vector<2x32xf32>
    %34 = arith.divf %32, %33 : vector<2x32xf32>
    %35 = vector.shape_cast %34 : vector<2x32xf32> to vector<2x32x1xf32>
    %36 = vector.broadcast %35 : vector<2x32x1xf32> to vector<2x32x256xf32>
    %37 = arith.mulf %0, %36 : vector<2x32x256xf32>
    %c0_17 = arith.constant 0 : index
    %c0_18 = arith.constant 0 : index
    %c0_19 = arith.constant 0 : index
    %38 = vector.load %arg6[%c0_17, %c0_18, %c0_19] : memref<2x32x256xf32, #tpu.memory_space<vmem>>, vector<2x32x256xf32>
    tpu.vector_store %arg6[%c0_17, %c0_18, %c0_19], %37 {strides = array<i32>} : memref<2x32x256xf32, #tpu.memory_space<vmem>>, vector<2x32x256xf32>,
    return
  }
  func.func @transform_0(%arg0: i32) -> (i32, i32, i32) {
    %c0_i32 = arith.constant 0 : i32
    %c0_i32_0 = arith.constant 0 : i32
    %c0_i32_1 = arith.constant 0 : i32
    return %arg0, %c0_i32, %c0_i32_0 : i32, i32, i32
  }
  func.func @transform_1(%arg0: i32) -> (i32, i32) {
    %c0_i32 = arith.constant 0 : i32
    %c0_i32_0 = arith.constant 0 : i32
    %c0_i32_1 = arith.constant 0 : i32
    return %c0_i32, %c0_i32_0 : i32, i32
  }
  func.func @transform_2(%arg0: i32) -> (i32, i32) {
    %c0_i32 = arith.constant 0 : i32
    %c0_i32_0 = arith.constant 0 : i32
    %c0_i32_1 = arith.constant 0 : i32
    return %c0_i32, %c0_i32_0 : i32, i32
  }
  func.func @transform_3(%arg0: i32) -> (i32, i32) {
    %c0_i32 = arith.constant 0 : i32
    %c0_i32_0 = arith.constant 0 : i32
    %c0_i32_1 = arith.constant 0 : i32
    return %c0_i32, %c0_i32_0 : i32, i32
  }
  func.func @transform_4(%arg0: i32) -> (i32, i32) {
    %c0_i32 = arith.constant 0 : i32
    %c0_i32_0 = arith.constant 0 : i32
    %c0_i32_1 = arith.constant 0 : i32
    return %c0_i32, %c0_i32_0 : i32, i32
  }
  func.func @transform_5(%arg0: i32) -> (i32, i32, i32) {
    %c0_i32 = arith.constant 0 : i32
    %c0_i32_0 = arith.constant 0 : i32
    %c0_i32_1 = arith.constant 0 : i32
    return %arg0, %c0_i32, %c0_i32_0 : i32, i32, i32
  }
}

</mosaic_0001>

<llo_original>
// kernel: tpu_custom_call.1
$region0: #{tpu_custom_call.1}
  #allocation0 [shape = 'u32[]', space=smem, size = 0x4, offset = 0x4, fixed_abs, tag = 'smem constant byte address 0x4 - core index']
  #allocation1 [shape = 'u32[72,128]{1,0:T(1,128)}', space=vmem, size = 0x9000, scoped, tag = 'internal scratch']
  %s0 = inlined_call_operand.hbm [shape: f32[2,32,256], index: 0, kind: input, shape index: {}]
  %s1 = inlined_call_operand.vmem [shape: f32[2,32], index: 1, kind: input, shape index: {}]
  %s2 = inlined_call_operand.vmem [shape: f32[1,2], index: 2, kind: input, shape index: {}]
  %s3 = inlined_call_operand.vmem [shape: f32[32,2], index: 3, kind: input, shape index: {}]
  %s4 = inlined_call_operand.vmem [shape: f32[1,32], index: 4, kind: input, shape index: {}]
  %s5 = inlined_call_operand.hbm [shape: f32[2,32,256], index: 5, kind: output, shape index: {}]
  %s6 = sld [smem:[#allocation0]]
  $region34: #{tpu_custom_call.1} parent=0
    _
  %s8 = ssub.s32 1, %s6
  %s9 = scalar_select 0, %s8, %s6
  $region1: #{tpu_custom_call.1} parent=0
    #allocation2 [shape = 'u8[65536]{0}', space=vmem, size = 0x10000, scoped, tag = 'input window, operand 0, single buffered']
    #allocation3 [shape = 's32[1]{0}', space=sflag, size = 0x4, scoped, tag = 'scoped memory for tpu_custom_call.1']
    #allocation4 [shape = 's32[1]{0}', space=sflag, size = 0x4, scoped, tag = 'scoped memory for tpu_custom_call.1']
    #allocation5 [shape = 'u8[65536]{0}', space=vmem, size = 0x10000, scoped, tag = 'output window, operand 0, single buffered']
    %10 = vsyncpa [#allocation3], 0
    %11 = vsyncpa [#allocation4], 0
    // Predicated region
    $region2: #{tpu_custom_call.1} parent=1 // pred_check
      _
    $region3: #{tpu_custom_call.1} parent=1 // pred_check_branch
      %13 = sbr.rel (0) target = $region5
    $region4: #{tpu_custom_call.1} parent=1 // pred_region
      %15 = vsyncadd [#allocation3], 0
      %s16 = sshll.u32 %s0, 4
      %s17 = int_to_ptr.hbm [resolvable:$true] %s16
      %s18 = sshll.u32 [#allocation2], 4
      %s19 = int_to_ptr.vmem [resolvable:$true] %s18
      %24 = dma.hbm_to_vmem [thread:$0]  %s17, 2048, %s19, [#allocation3], 256, 256, 16
    $region5: #{tpu_custom_call.1} parent=1 // pred_fallthru
      _
    // Predicated region
    $region6: #{tpu_custom_call.1} parent=1 // pred_check
      _
    $region7: #{tpu_custom_call.1} parent=1 // pred_check_branch
      %26 = sbr.rel (0) target = $region9
    $region8: #{tpu_custom_call.1} parent=1 // pred_region
      _
    $region9: #{tpu_custom_call.1} parent=1 // pred_fallthru
      _
    // Predicated region
    $region10: #{tpu_custom_call.1} parent=1 // pred_check
      _
    $region11: #{tpu_custom_call.1} parent=1 // pred_check_branch
      %28 = sbr.rel (0) target = $region13
    $region12: #{tpu_custom_call.1} parent=1 // pred_region
      _
    $region13: #{tpu_custom_call.1} parent=1 // pred_fallthru
      _
    // Predicated region
    $region14: #{tpu_custom_call.1} parent=1 // pred_check
      _
    $region15: #{tpu_custom_call.1} parent=1 // pred_check_branch
      %30 = sbr.rel (0) target = $region17
    $region16: #{tpu_custom_call.1} parent=1 // pred_region
      _
    $region17: #{tpu_custom_call.1} parent=1 // pred_fallthru
      _
    // Predicated region
    $region18: #{tpu_custom_call.1} parent=1 // pred_check
      _
    $region19: #{tpu_custom_call.1} parent=1 // pred_check_branch
      %32 = sbr.rel (0) target = $region21
    $region20: #{tpu_custom_call.1} parent=1 // pred_region
      _
    $region21: #{tpu_custom_call.1} parent=1 // pred_fallthru
      _
    // Predicated region
    $region22: #{tpu_custom_call.1} parent=1 // pred_check
      _
    $region23: #{tpu_custom_call.1} parent=1 // pred_check_branch
      %34 = sbr.rel (0) target = $region25
    $region24: #{tpu_custom_call.1} parent=1 // pred_region
      %36 = dma.done [#allocation3], 2048
    $region25: #{tpu_custom_call.1} parent=1 // pred_fallthru
      _
    %v37 = vld [vmem:[#allocation2] sm:$0xff]
    %v38 = vld [vmem:[#allocation2 + $0x8] sm:$0xff]
    %v39 = vld [vmem:[#allocation2 + $0x10] sm:$0xff]
    %v40 = vld [vmem:[#allocation2 + $0x18] sm:$0xff]
    %v41 = vld [vmem:[#allocation2 + $0x20] sm:$0xff]
    %v42 = vld [vmem:[#allocation2 + $0x28] sm:$0xff]
    %v43 = vld [vmem:[#allocation2 + $0x30] sm:$0xff]
    %v44 = vld [vmem:[#allocation2 + $0x38] sm:$0xff]
    %v45 = vld [vmem:[#allocation2 + $0x40] sm:$0xff]
    %v46 = vld [vmem:[#allocation2 + $0x48] sm:$0xff]
    %v47 = vld [vmem:[#allocation2 + $0x50] sm:$0xff]
    %v48 = vld [vmem:[#allocation2 + $0x58] sm:$0xff]
    %v49 = vld [vmem:[#allocation2 + $0x60] sm:$0xff]
    %v50 = vld [vmem:[#allocation2 + $0x68] sm:$0xff]
    %v51 = vld [vmem:[#allocation2 + $0x70] sm:$0xff]
    %v52 = vld [vmem:[#allocation2 + $0x78] sm:$0xff]
    %v53 = vadd.f32 %v37, %v38
    %54 = vadd.xlane.f32.xlu0 %v53
    %v55 = vpop.xlane.xlu0 %54
    %v56 = vadd.f32 %v39, %v40
    %57 = vadd.xlane.f32.xlu0 %v56
    %v58 = vpop.xlane.xlu0 %57
    %v59 = vadd.f32 %v41, %v42
    %60 = vadd.xlane.f32.xlu0 %v59
    %v61 = vpop.xlane.xlu0 %60
    %v62 = vadd.f32 %v43, %v44
    %63 = vadd.xlane.f32.xlu0 %v62
    %v64 = vpop.xlane.xlu0 %63
    %v65 = vadd.f32 %v45, %v46
    %66 = vadd.xlane.f32.xlu0 %v65
    %v67 = vpop.xlane.xlu0 %66
    %v68 = vadd.f32 %v47, %v48
    %69 = vadd.xlane.f32.xlu0 %v68
    %v70 = vpop.xlane.xlu0 %69
    %v71 = vadd.f32 %v49, %v50
    %72 = vadd.xlane.f32.xlu0 %v71
    %v73 = vpop.xlane.xlu0 %72
    %v74 = vadd.f32 %v51, %v52
    %75 = vadd.xlane.f32.xlu0 %v74
    %v76 = vpop.xlane.xlu0 %75
    %v77 = vrcp.pop 256.0
    %v78 = vmul.f32 256.0, %v77
    %v79 = vsub.f32 1.0, %v78
    %v80 = vmul.f32 %v77, %v79
    %v81 = vadd.f32 %v77, %v80
    %vm82 = vweird.f32 %v77
    %v83 = vsel %vm82, %v77, %v81
    %v84 = vmul.f32 %v55, %v83
    %v85 = vmul.f32 %v58, %v83
    %v86 = vmul.f32 %v61, %v83
    %v87 = vmul.f32 %v64, %v83
    %v88 = vmul.f32 %v67, %v83
    %v89 = vmul.f32 %v70, %v83
    %v90 = vmul.f32 %v73, %v83
    %v91 = vmul.f32 %v76, %v83
    %v92 = vmax.f32 %v37, %v38
    %93 = vmax.xlane.f32.xlu0 %v92
    %v94 = vpop.xlane.xlu0 %93
    %v95 = vmax.f32 %v39, %v40
    %96 = vmax.xlane.f32.xlu0 %v95
    %v97 = vpop.xlane.xlu0 %96
    %v98 = vmax.f32 %v41, %v42
    %99 = vmax.xlane.f32.xlu0 %v98
    %v100 = vpop.xlane.xlu0 %99
    %v101 = vmax.f32 %v43, %v44
    %102 = vmax.xlane.f32.xlu0 %v101
    %v103 = vpop.xlane.xlu0 %102
    %v104 = vmax.f32 %v45, %v46
    %105 = vmax.xlane.f32.xlu0 %v104
    %v106 = vpop.xlane.xlu0 %105
    %v107 = vmax.f32 %v47, %v48
    %108 = vmax.xlane.f32.xlu0 %v107
    %v109 = vpop.xlane.xlu0 %108
    %v110 = vmax.f32 %v49, %v50
    %111 = vmax.xlane.f32.xlu0 %v110
    %v112 = vpop.xlane.xlu0 %111
    %v113 = vmax.f32 %v51, %v52
    %114 = vmax.xlane.f32.xlu0 %v113
    %v115 = vpop.xlane.xlu0 %114
    %v116 = vadd.f32 %v84, %v94
    %v117 = vadd.f32 %v85, %v97
    %v118 = vadd.f32 %v86, %v100
    %v119 = vadd.f32 %v87, %v103
    %v120 = vadd.f32 %v88, %v106
    %v121 = vadd.f32 %v89, %v109
    %v122 = vadd.f32 %v90, %v112
    %v123 = vadd.f32 %v91, %v115
    %v124 = vld [vmem:[%s1] sm:$0x3]
    %v125 = vld [vmem:[%s2] sm:$0x1]
    %v126 = vld [vmem:[%s3] sm:$0xff]
    %v127 = vld [vmem:[%s3 + $0x8] sm:$0xff]
    %v128 = vld [vmem:[%s3 + $0x10] sm:$0xff]
    %v129 = vld [vmem:[%s3 + $0x18] sm:$0xff]
    %v130 = vld [vmem:[%s4] sm:$0x1]
    %v132 = vperm.slane %v124, 0
    %v133 = vlaneseq
    %v134 = vshrl.u32 %v133, 7
    %136 = vset.pattern.permute.xlu0 %v134
    %137 = vperm.xlu0 %136, %v132
    %v138 = vpop.permute.xlu0 %137
    %v139 = vlaneseq
    %v140 = vshrl.u32 %v139, 7
    %v141 = vadd.s32 %v140, 8
    %142 = vset.pattern.permute.xlu0 %v141
    %143 = vperm.xlu0 %142, %v132
    %v144 = vpop.permute.xlu0 %143
    %v145 = vlaneseq
    %v146 = vshrl.u32 %v145, 7
    %v147 = vadd.s32 %v146, 16
    %148 = vset.pattern.permute.xlu0 %v147
    %149 = vperm.xlu0 %148, %v132
    %v150 = vpop.permute.xlu0 %149
    %v151 = vlaneseq
    %v152 = vshrl.u32 %v151, 7
    %v153 = vadd.s32 %v152, 24
    %154 = vset.pattern.permute.xlu0 %v153
    %155 = vperm.xlu0 %154, %v132
    %v156 = vpop.permute.xlu0 %155
    %v157 = vperm.slane %v124, 1
    %v158 = vlaneseq
    %v159 = vshrl.u32 %v158, 7
    %161 = vset.pattern.permute.xlu0 %v159
    %162 = vperm.xlu0 %161, %v157
    %v163 = vpop.permute.xlu0 %162
    %v164 = vlaneseq
    %v165 = vshrl.u32 %v164, 7
    %v166 = vadd.s32 %v165, 8
    %167 = vset.pattern.permute.xlu0 %v166
    %168 = vperm.xlu0 %167, %v157
    %v169 = vpop.permute.xlu0 %168
    %v170 = vlaneseq
    %v171 = vshrl.u32 %v170, 7
    %v172 = vadd.s32 %v171, 16
    %173 = vset.pattern.permute.xlu0 %v172
    %174 = vperm.xlu0 %173, %v157
    %v175 = vpop.permute.xlu0 %174
    %v176 = vlaneseq
    %v177 = vshrl.u32 %v176, 7
    %v178 = vadd.s32 %v177, 24
    %179 = vset.pattern.permute.xlu0 %v178
    %180 = vperm.xlu0 %179, %v157
    %v181 = vpop.permute.xlu0 %180
    %v190 = vmul.f32 %v116, %v138
    %v191 = vmul.f32 %v117, %v144
    %v192 = vmul.f32 %v118, %v150
    %v193 = vmul.f32 %v119, %v156
    %v194 = vmul.f32 %v116, %v163
    %v195 = vmul.f32 %v117, %v169
    %v196 = vmul.f32 %v118, %v175
    %v197 = vmul.f32 %v119, %v181
    %v198 = vmul.f32 %v120, %v138
    %v199 = vmul.f32 %v121, %v144
    %v200 = vmul.f32 %v122, %v150
    %v201 = vmul.f32 %v123, %v156
    %v202 = vmul.f32 %v120, %v163
    %v203 = vmul.f32 %v121, %v169
    %v204 = vmul.f32 %v122, %v175
    %v205 = vmul.f32 %v123, %v181
    %222 = vset.pattern.permute.xlu0 0
    %223 = vperm.xlu0 %222, %v190
    %v224 = vpop.permute.xlu0 %223
    %225 = vset.pattern.permute.xlu0 0
    %226 = vperm.xlu0 %225, %v191
    %v227 = vpop.permute.xlu0 %226
    %228 = vset.pattern.permute.xlu0 0
    %229 = vperm.xlu0 %228, %v192
    %v230 = vpop.permute.xlu0 %229
    %231 = vset.pattern.permute.xlu0 0
    %232 = vperm.xlu0 %231, %v193
    %v233 = vpop.permute.xlu0 %232
    %234 = vset.pattern.permute.xlu0 0
    %235 = vperm.xlu0 %234, %v194
    %v236 = vpop.permute.xlu0 %235
    %237 = vset.pattern.permute.xlu0 0
    %238 = vperm.xlu0 %237, %v195
    %v239 = vpop.permute.xlu0 %238
    %240 = vset.pattern.permute.xlu0 0
    %241 = vperm.xlu0 %240, %v196
    %v242 = vpop.permute.xlu0 %241
    %243 = vset.pattern.permute.xlu0 0
    %244 = vperm.xlu0 %243, %v197
    %v245 = vpop.permute.xlu0 %244
    %246 = vset.pattern.permute.xlu0 0
    %247 = vperm.xlu0 %246, %v198
    %v248 = vpop.permute.xlu0 %247
    %249 = vset.pattern.permute.xlu0 0
    %250 = vperm.xlu0 %249, %v199
    %v251 = vpop.permute.xlu0 %250
    %252 = vset.pattern.permute.xlu0 0
    %253 = vperm.xlu0 %252, %v200
    %v254 = vpop.permute.xlu0 %253
    %255 = vset.pattern.permute.xlu0 0
    %256 = vperm.xlu0 %255, %v201
    %v257 = vpop.permute.xlu0 %256
    %258 = vset.pattern.permute.xlu0 0
    %259 = vperm.xlu0 %258, %v202
    %v260 = vpop.permute.xlu0 %259
    %261 = vset.pattern.permute.xlu0 0
    %262 = vperm.xlu0 %261, %v203
    %v263 = vpop.permute.xlu0 %262
    %264 = vset.pattern.permute.xlu0 0
    %265 = vperm.xlu0 %264, %v204
    %v266 = vpop.permute.xlu0 %265
    %267 = vset.pattern.permute.xlu0 0
    %268 = vperm.xlu0 %267, %v205
    %v269 = vpop.permute.xlu0 %268
    %v270 = vlaneseq
    %v271 = vand.u32 %v270, 127
    %v272 = vperm.slane %v224, %v271
    %v273 = vadd.s32 %v271, 4294967288
    %v274 = vperm.slane %v227, %v273
    %vm275 = vcmask 130112
    %v276 = vsel %vm275, %v274, %v272
    %v277 = vadd.s32 %v271, 4294967280
    %v278 = vperm.slane %v230, %v277
    %vm279 = vcmask 195712
    %v280 = vsel %vm279, %v278, %v276
    %v281 = vadd.s32 %v271, 4294967272
    %v282 = vperm.slane %v233, %v281
    %vm283 = vcmask 261312
    %v284 = vsel %vm283, %v282, %v280
    %v285 = vperm.slane %v236, %v271
    %v286 = vperm.slane %v239, %v273
    %v287 = vsel %vm275, %v286, %v285
    %v288 = vperm.slane %v242, %v277
    %v289 = vsel %vm279, %v288, %v287
    %v290 = vperm.slane %v245, %v281
    %v291 = vsel %vm283, %v290, %v289
    %v292 = vperm.slane %v248, %v271
    %v293 = vperm.slane %v251, %v273
    %v294 = vsel %vm275, %v293, %v292
    %v295 = vperm.slane %v254, %v277
    %v296 = vsel %vm279, %v295, %v294
    %v297 = vperm.slane %v257, %v281
    %v298 = vsel %vm283, %v297, %v296
    %v299 = vperm.slane %v260, %v271
    %v300 = vperm.slane %v263, %v273
    %v301 = vsel %vm275, %v300, %v299
    %v302 = vperm.slane %v266, %v277
    %v303 = vsel %vm279, %v302, %v301
    %v304 = vperm.slane %v269, %v281
    %v305 = vsel %vm283, %v304, %v303
    %vm306 = vcmask 1041409
    %v307 = vsel %vm306, %v291, %v284
    %v308 = vsel %vm306, %v305, %v298
    %vm311 = vcmask 254976
    %v312 = vsel %vm311, %v307, 0.0
    %313 = vadd.xlane.f32.xlu0 %v312
    %v314 = vpop.xlane.xlu0 %313
    %v315 = vsel %vm311, %v308, 0.0
    %316 = vadd.xlane.f32.xlu0 %v315
    %v317 = vpop.xlane.xlu0 %316
    %v318 = vmul.f32 %v125, 2.0
    %v320 = vperm.slane %v318, 0
    %v321 = vlaneseq
    %v322 = vshrl.u32 %v321, 7
    %324 = vset.pattern.permute.xlu0 %v322
    %325 = vperm.xlu0 %324, %v320
    %v326 = vpop.permute.xlu0 %325
    %v328 = vadd.f32 %v314, %v326
    %v329 = vadd.f32 %v317, %v326
    %v330 = vmax.f32 %v328, 0.0
    %v331 = vmax.f32 %v329, 0.0
    %v336 = vperm.slane %v126, 0
    %v337 = vlaneseq
    %v338 = vshrl.u32 %v337, 7
    %340 = vset.pattern.permute.xlu0 %v338
    %341 = vperm.xlu0 %340, %v336
    %v342 = vpop.permute.xlu0 %341
    %v343 = vperm.slane %v126, 1
    %v344 = vlaneseq
    %v345 = vshrl.u32 %v344, 7
    %347 = vset.pattern.permute.xlu0 %v345
    %348 = vperm.xlu0 %347, %v343
    %v349 = vpop.permute.xlu0 %348
    %v350 = vperm.slane %v126, 2
    %v351 = vlaneseq
    %v352 = vshrl.u32 %v351, 7
    %354 = vset.pattern.permute.xlu0 %v352
    %355 = vperm.xlu0 %354, %v350
    %v356 = vpop.permute.xlu0 %355
    %v357 = vperm.slane %v126, 3
    %v358 = vlaneseq
    %v359 = vshrl.u32 %v358, 7
    %361 = vset.pattern.permute.xlu0 %v359
    %362 = vperm.xlu0 %361, %v357
    %v363 = vpop.permute.xlu0 %362
    %v364 = vperm.slane %v126, 4
    %v365 = vlaneseq
    %v366 = vshrl.u32 %v365, 7
    %368 = vset.pattern.permute.xlu0 %v366
    %369 = vperm.xlu0 %368, %v364
    %v370 = vpop.permute.xlu0 %369
    %v371 = vperm.slane %v126, 5
    %v372 = vlaneseq
    %v373 = vshrl.u32 %v372, 7
    %375 = vset.pattern.permute.xlu0 %v373
    %376 = vperm.xlu0 %375, %v371
    %v377 = vpop.permute.xlu0 %376
    %v378 = vperm.slane %v126, 6
    %v379 = vlaneseq
    %v380 = vshrl.u32 %v379, 7
    %382 = vset.pattern.permute.xlu0 %v380
    %383 = vperm.xlu0 %382, %v378
    %v384 = vpop.permute.xlu0 %383
    %v385 = vperm.slane %v126, 7
    %v386 = vlaneseq
    %v387 = vshrl.u32 %v386, 7
    %389 = vset.pattern.permute.xlu0 %v387
    %390 = vperm.xlu0 %389, %v385
    %v391 = vpop.permute.xlu0 %390
    %v392 = vperm.slane %v127, 0
    %v393 = vlaneseq
    %v394 = vshrl.u32 %v393, 7
    %396 = vset.pattern.permute.xlu0 %v394
    %397 = vperm.xlu0 %396, %v392
    %v398 = vpop.permute.xlu0 %397
    %v399 = vperm.slane %v127, 1
    %v400 = vlaneseq
    %v401 = vshrl.u32 %v400, 7
    %403 = vset.pattern.permute.xlu0 %v401
    %404 = vperm.xlu0 %403, %v399
    %v405 = vpop.permute.xlu0 %404
    %v406 = vperm.slane %v127, 2
    %v407 = vlaneseq
    %v408 = vshrl.u32 %v407, 7
    %410 = vset.pattern.permute.xlu0 %v408
    %411 = vperm.xlu0 %410, %v406
    %v412 = vpop.permute.xlu0 %411
    %v413 = vperm.slane %v127, 3
    %v414 = vlaneseq
    %v415 = vshrl.u32 %v414, 7
    %417 = vset.pattern.permute.xlu0 %v415
    %418 = vperm.xlu0 %417, %v413
    %v419 = vpop.permute.xlu0 %418
    %v420 = vperm.slane %v127, 4
    %v421 = vlaneseq
    %v422 = vshrl.u32 %v421, 7
    %424 = vset.pattern.permute.xlu0 %v422
    %425 = vperm.xlu0 %424, %v420
    %v426 = vpop.permute.xlu0 %425
    %v427 = vperm.slane %v127, 5
    %v428 = vlaneseq
    %v429 = vshrl.u32 %v428, 7
    %431 = vset.pattern.permute.xlu0 %v429
    %432 = vperm.xlu0 %431, %v427
    %v433 = vpop.permute.xlu0 %432
    %v434 = vperm.slane %v127, 6
    %v435 = vlaneseq
    %v436 = vshrl.u32 %v435, 7
    %438 = vset.pattern.permute.xlu0 %v436
    %439 = vperm.xlu0 %438, %v434
    %v440 = vpop.permute.xlu0 %439
    %v441 = vperm.slane %v127, 7
    %v442 = vlaneseq
    %v443 = vshrl.u32 %v442, 7
    %445 = vset.pattern.permute.xlu0 %v443
    %446 = vperm.xlu0 %445, %v441
    %v447 = vpop.permute.xlu0 %446
    %v448 = vperm.slane %v128, 0
    %v449 = vlaneseq
    %v450 = vshrl.u32 %v449, 7
    %452 = vset.pattern.permute.xlu0 %v450
    %453 = vperm.xlu0 %452, %v448
    %v454 = vpop.permute.xlu0 %453
    %v455 = vperm.slane %v128, 1
    %v456 = vlaneseq
    %v457 = vshrl.u32 %v456, 7
    %459 = vset.pattern.permute.xlu0 %v457
    %460 = vperm.xlu0 %459, %v455
    %v461 = vpop.permute.xlu0 %460
    %v462 = vperm.slane %v128, 2
    %v463 = vlaneseq
    %v464 = vshrl.u32 %v463, 7
    %466 = vset.pattern.permute.xlu0 %v464
    %467 = vperm.xlu0 %466, %v462
    %v468 = vpop.permute.xlu0 %467
    %v469 = vperm.slane %v128, 3
    %v470 = vlaneseq
    %v471 = vshrl.u32 %v470, 7
    %473 = vset.pattern.permute.xlu0 %v471
    %474 = vperm.xlu0 %473, %v469
    %v475 = vpop.permute.xlu0 %474
    %v476 = vperm.slane %v128, 4
    %v477 = vlaneseq
    %v478 = vshrl.u32 %v477, 7
    %480 = vset.pattern.permute.xlu0 %v478
    %481 = vperm.xlu0 %480, %v476
    %v482 = vpop.permute.xlu0 %481
    %v483 = vperm.slane %v128, 5
    %v484 = vlaneseq
    %v485 = vshrl.u32 %v484, 7
    %487 = vset.pattern.permute.xlu0 %v485
    %488 = vperm.xlu0 %487, %v483
    %v489 = vpop.permute.xlu0 %488
    %v490 = vperm.slane %v128, 6
    %v491 = vlaneseq
    %v492 = vshrl.u32 %v491, 7
    %494 = vset.pattern.permute.xlu0 %v492
    %495 = vperm.xlu0 %494, %v490
    %v496 = vpop.permute.xlu0 %495
    %v497 = vperm.slane %v128, 7
    %v498 = vlaneseq
    %v499 = vshrl.u32 %v498, 7
    %501 = vset.pattern.permute.xlu0 %v499
    %502 = vperm.xlu0 %501, %v497
    %v503 = vpop.permute.xlu0 %502
    %v504 = vperm.slane %v129, 0
    %v505 = vlaneseq
    %v506 = vshrl.u32 %v505, 7
    %508 = vset.pattern.permute.xlu0 %v506
    %509 = vperm.xlu0 %508, %v504
    %v510 = vpop.permute.xlu0 %509
    %v511 = vperm.slane %v129, 1
    %v512 = vlaneseq
    %v513 = vshrl.u32 %v512, 7
    %515 = vset.pattern.permute.xlu0 %v513
    %516 = vperm.xlu0 %515, %v511
    %v517 = vpop.permute.xlu0 %516
    %v518 = vperm.slane %v129, 2
    %v519 = vlaneseq
    %v520 = vshrl.u32 %v519, 7
    %522 = vset.pattern.permute.xlu0 %v520
    %523 = vperm.xlu0 %522, %v518
    %v524 = vpop.permute.xlu0 %523
    %v525 = vperm.slane %v129, 3
    %v526 = vlaneseq
    %v527 = vshrl.u32 %v526, 7
    %529 = vset.pattern.permute.xlu0 %v527
    %530 = vperm.xlu0 %529, %v525
    %v531 = vpop.permute.xlu0 %530
    %v532 = vperm.slane %v129, 4
    %v533 = vlaneseq
    %v534 = vshrl.u32 %v533, 7
    %536 = vset.pattern.permute.xlu0 %v534
    %537 = vperm.xlu0 %536, %v532
    %v538 = vpop.permute.xlu0 %537
    %v539 = vperm.slane %v129, 5
    %v540 = vlaneseq
    %v541 = vshrl.u32 %v540, 7
    %543 = vset.pattern.permute.xlu0 %v541
    %544 = vperm.xlu0 %543, %v539
    %v545 = vpop.permute.xlu0 %544
    %v546 = vperm.slane %v129, 6
    %v547 = vlaneseq
    %v548 = vshrl.u32 %v547, 7
    %550 = vset.pattern.permute.xlu0 %v548
    %551 = vperm.xlu0 %550, %v546
    %v552 = vpop.permute.xlu0 %551
    %v553 = vperm.slane %v129, 7
    %v554 = vlaneseq
    %v555 = vshrl.u32 %v554, 7
    %557 = vset.pattern.permute.xlu0 %v555
    %558 = vperm.xlu0 %557, %v553
    %v559 = vpop.permute.xlu0 %558
    %v592 = vmul.f32 %v330, %v342
    %v593 = vmul.f32 %v330, %v349
    %v594 = vmul.f32 %v330, %v356
    %v595 = vmul.f32 %v330, %v363
    %v596 = vmul.f32 %v330, %v370
    %v597 = vmul.f32 %v330, %v377
    %v598 = vmul.f32 %v330, %v384
    %v599 = vmul.f32 %v330, %v391
    %v600 = vmul.f32 %v330, %v398
    %v601 = vmul.f32 %v330, %v405
    %v602 = vmul.f32 %v330, %v412
    %v603 = vmul.f32 %v330, %v419
    %v604 = vmul.f32 %v330, %v426
    %v605 = vmul.f32 %v330, %v433
    %v606 = vmul.f32 %v330, %v440
    %v607 = vmul.f32 %v330, %v447
    %v608 = vmul.f32 %v330, %v454
    %v609 = vmul.f32 %v330, %v461
    %v610 = vmul.f32 %v330, %v468
    %v611 = vmul.f32 %v330, %v475
    %v612 = vmul.f32 %v330, %v482
    %v613 = vmul.f32 %v330, %v489
    %v614 = vmul.f32 %v330, %v496
    %v615 = vmul.f32 %v330, %v503
    %v616 = vmul.f32 %v330, %v510
    %v617 = vmul.f32 %v330, %v517
    %v618 = vmul.f32 %v330, %v524
    %v619 = vmul.f32 %v330, %v531
    %v620 = vmul.f32 %v330, %v538
    %v621 = vmul.f32 %v330, %v545
    %v622 = vmul.f32 %v330, %v552
    %v623 = vmul.f32 %v330, %v559
    %v624 = vmul.f32 %v331, %v342
    %v625 = vmul.f32 %v331, %v349
    %v626 = vmul.f32 %v331, %v356
    %v627 = vmul.f32 %v331, %v363
    %v628 = vmul.f32 %v331, %v370
    %v629 = vmul.f32 %v331, %v377
    %v630 = vmul.f32 %v331, %v384
    %v631 = vmul.f32 %v331, %v391
    %v632 = vmul.f32 %v331, %v398
    %v633 = vmul.f32 %v331, %v405
    %v634 = vmul.f32 %v331, %v412
    %v635 = vmul.f32 %v331, %v419
    %v636 = vmul.f32 %v331, %v426
    %v637 = vmul.f32 %v331, %v433
    %v638 = vmul.f32 %v331, %v440
    %v639 = vmul.f32 %v331, %v447
    %v640 = vmul.f32 %v331, %v454
    %v641 = vmul.f32 %v331, %v461
    %v642 = vmul.f32 %v331, %v468
    %v643 = vmul.f32 %v331, %v475
    %v644 = vmul.f32 %v331, %v482
    %v645 = vmul.f32 %v331, %v489
    %v646 = vmul.f32 %v331, %v496
    %v647 = vmul.f32 %v331, %v503
    %v648 = vmul.f32 %v331, %v510
    %v649 = vmul.f32 %v331, %v517
    %v650 = vmul.f32 %v331, %v524
    %v651 = vmul.f32 %v331, %v531
    %v652 = vmul.f32 %v331, %v538
    %v653 = vmul.f32 %v331, %v545
    %v654 = vmul.f32 %v331, %v552
    %v655 = vmul.f32 %v331, %v559
    %720 = vset.pattern.permute.xlu0 0
    %721 = vperm.xlu0 %720, %v592
    %v722 = vpop.permute.xlu0 %721
    %723 = vset.pattern.permute.xlu0 0
    %724 = vperm.xlu0 %723, %v593
    %v725 = vpop.permute.xlu0 %724
    %726 = vset.pattern.permute.xlu0 0
    %727 = vperm.xlu0 %726, %v594
    %v728 = vpop.permute.xlu0 %727
    %729 = vset.pattern.permute.xlu0 0
    %730 = vperm.xlu0 %729, %v595
    %v731 = vpop.permute.xlu0 %730
    %732 = vset.pattern.permute.xlu0 0
    %733 = vperm.xlu0 %732, %v596
    %v734 = vpop.permute.xlu0 %733
    %735 = vset.pattern.permute.xlu0 0
    %736 = vperm.xlu0 %735, %v597
    %v737 = vpop.permute.xlu0 %736
    %738 = vset.pattern.permute.xlu0 0
    %739 = vperm.xlu0 %738, %v598
    %v740 = vpop.permute.xlu0 %739
    %741 = vset.pattern.permute.xlu0 0
    %742 = vperm.xlu0 %741, %v599
    %v743 = vpop.permute.xlu0 %742
    %744 = vset.pattern.permute.xlu0 0
    %745 = vperm.xlu0 %744, %v600
    %v746 = vpop.permute.xlu0 %745
    %747 = vset.pattern.permute.xlu0 0
    %748 = vperm.xlu0 %747, %v601
    %v749 = vpop.permute.xlu0 %748
    %750 = vset.pattern.permute.xlu0 0
    %751 = vperm.xlu0 %750, %v602
    %v752 = vpop.permute.xlu0 %751
    %753 = vset.pattern.permute.xlu0 0
    %754 = vperm.xlu0 %753, %v603
    %v755 = vpop.permute.xlu0 %754
    %756 = vset.pattern.permute.xlu0 0
    %757 = vperm.xlu0 %756, %v604
    %v758 = vpop.permute.xlu0 %757
    %759 = vset.pattern.permute.xlu0 0
    %760 = vperm.xlu0 %759, %v605
    %v761 = vpop.permute.xlu0 %760
    %762 = vset.pattern.permute.xlu0 0
    %763 = vperm.xlu0 %762, %v606
    %v764 = vpop.permute.xlu0 %763
    %765 = vset.pattern.permute.xlu0 0
    %766 = vperm.xlu0 %765, %v607
    %v767 = vpop.permute.xlu0 %766
    %768 = vset.pattern.permute.xlu0 0
    %769 = vperm.xlu0 %768, %v608
    %v770 = vpop.permute.xlu0 %769
    %771 = vset.pattern.permute.xlu0 0
    %772 = vperm.xlu0 %771, %v609
    %v773 = vpop.permute.xlu0 %772
    %774 = vset.pattern.permute.xlu0 0
    %775 = vperm.xlu0 %774, %v610
    %v776 = vpop.permute.xlu0 %775
    %777 = vset.pattern.permute.xlu0 0
    %778 = vperm.xlu0 %777, %v611
    %v779 = vpop.permute.xlu0 %778
    %780 = vset.pattern.permute.xlu0 0
    %781 = vperm.xlu0 %780, %v612
    %v782 = vpop.permute.xlu0 %781
    %783 = vset.pattern.permute.xlu0 0
    %784 = vperm.xlu0 %783, %v613
    %v785 = vpop.permute.xlu0 %784
    %786 = vset.pattern.permute.xlu0 0
    %787 = vperm.xlu0 %786, %v614
    %v788 = vpop.permute.xlu0 %787
    %789 = vset.pattern.permute.xlu0 0
    %790 = vperm.xlu0 %789, %v615
    %v791 = vpop.permute.xlu0 %790
    %792 = vset.pattern.permute.xlu0 0
    %793 = vperm.xlu0 %792, %v616
    %v794 = vpop.permute.xlu0 %793
    %795 = vset.pattern.permute.xlu0 0
    %796 = vperm.xlu0 %795, %v617
    %v797 = vpop.permute.xlu0 %796
    %798 = vset.pattern.permute.xlu0 0
    %799 = vperm.xlu0 %798, %v618
    %v800 = vpop.permute.xlu0 %799
    %801 = vset.pattern.permute.xlu0 0
    %802 = vperm.xlu0 %801, %v619
    %v803 = vpop.permute.xlu0 %802
    %804 = vset.pattern.permute.xlu0 0
    %805 = vperm.xlu0 %804, %v620
    %v806 = vpop.permute.xlu0 %805
    %807 = vset.pattern.permute.xlu0 0
    %808 = vperm.xlu0 %807, %v621
    %v809 = vpop.permute.xlu0 %808
    %810 = vset.pattern.permute.xlu0 0
    %811 = vperm.xlu0 %810, %v622
    %v812 = vpop.permute.xlu0 %811
    %813 = vset.pattern.permute.xlu0 0
    %814 = vperm.xlu0 %813, %v623
    %v815 = vpop.permute.xlu0 %814
    %816 = vset.pattern.permute.xlu0 0
    %817 = vperm.xlu0 %816, %v624
    %v818 = vpop.permute.xlu0 %817
    %819 = vset.pattern.permute.xlu0 0
    %820 = vperm.xlu0 %819, %v625
    %v821 = vpop.permute.xlu0 %820
    %822 = vset.pattern.permute.xlu0 0
    %823 = vperm.xlu0 %822, %v626
    %v824 = vpop.permute.xlu0 %823
    %825 = vset.pattern.permute.xlu0 0
    %826 = vperm.xlu0 %825, %v627
    %v827 = vpop.permute.xlu0 %826
    %828 = vset.pattern.permute.xlu0 0
    %829 = vperm.xlu0 %828, %v628
    %v830 = vpop.permute.xlu0 %829
    %831 = vset.pattern.permute.xlu0 0
    %832 = vperm.xlu0 %831, %v629
    %v833 = vpop.permute.xlu0 %832
    %834 = vset.pattern.permute.xlu0 0
    %835 = vperm.xlu0 %834, %v630
    %v836 = vpop.permute.xlu0 %835
    %837 = vset.pattern.permute.xlu0 0
    %838 = vperm.xlu0 %837, %v631
    %v839 = vpop.permute.xlu0 %838
    %840 = vset.pattern.permute.xlu0 0
    %841 = vperm.xlu0 %840, %v632
    %v842 = vpop.permute.xlu0 %841
    %843 = vset.pattern.permute.xlu0 0
    %844 = vperm.xlu0 %843, %v633
    %v845 = vpop.permute.xlu0 %844
    %846 = vset.pattern.permute.xlu0 0
    %847 = vperm.xlu0 %846, %v634
    %v848 = vpop.permute.xlu0 %847
    %849 = vset.pattern.permute.xlu0 0
    %850 = vperm.xlu0 %849, %v635
    %v851 = vpop.permute.xlu0 %850
    %852 = vset.pattern.permute.xlu0 0
    %853 = vperm.xlu0 %852, %v636
    %v854 = vpop.permute.xlu0 %853
    %855 = vset.pattern.permute.xlu0 0
    %856 = vperm.xlu0 %855, %v637
    %v857 = vpop.permute.xlu0 %856
    %858 = vset.pattern.permute.xlu0 0
    %859 = vperm.xlu0 %858, %v638
    %v860 = vpop.permute.xlu0 %859
    %861 = vset.pattern.permute.xlu0 0
    %862 = vperm.xlu0 %861, %v639
    %v863 = vpop.permute.xlu0 %862
    %864 = vset.pattern.permute.xlu0 0
    %865 = vperm.xlu0 %864, %v640
    %v866 = vpop.permute.xlu0 %865
    %867 = vset.pattern.permute.xlu0 0
    %868 = vperm.xlu0 %867, %v641
    %v869 = vpop.permute.xlu0 %868
    %870 = vset.pattern.permute.xlu0 0
    %871 = vperm.xlu0 %870, %v642
    %v872 = vpop.permute.xlu0 %871
    %873 = vset.pattern.permute.xlu0 0
    %874 = vperm.xlu0 %873, %v643
    %v875 = vpop.permute.xlu0 %874
    %876 = vset.pattern.permute.xlu0 0
    %877 = vperm.xlu0 %876, %v644
    %v878 = vpop.permute.xlu0 %877
    %879 = vset.pattern.permute.xlu0 0
    %880 = vperm.xlu0 %879, %v645
    %v881 = vpop.permute.xlu0 %880
    %882 = vset.pattern.permute.xlu0 0
    %883 = vperm.xlu0 %882, %v646
    %v884 = vpop.permute.xlu0 %883
    %885 = vset.pattern.permute.xlu0 0
    %886 = vperm.xlu0 %885, %v647
    %v887 = vpop.permute.xlu0 %886
    %888 = vset.pattern.permute.xlu0 0
    %889 = vperm.xlu0 %888, %v648
    %v890 = vpop.permute.xlu0 %889
    %891 = vset.pattern.permute.xlu0 0
    %892 = vperm.xlu0 %891, %v649
    %v893 = vpop.permute.xlu0 %892
    %894 = vset.pattern.permute.xlu0 0
    %895 = vperm.xlu0 %894, %v650
    %v896 = vpop.permute.xlu0 %895
    %897 = vset.pattern.permute.xlu0 0
    %898 = vperm.xlu0 %897, %v651
    %v899 = vpop.permute.xlu0 %898
    %900 = vset.pattern.permute.xlu0 0
    %901 = vperm.xlu0 %900, %v652
    %v902 = vpop.permute.xlu0 %901
    %903 = vset.pattern.permute.xlu0 0
    %904 = vperm.xlu0 %903, %v653
    %v905 = vpop.permute.xlu0 %904
    %906 = vset.pattern.permute.xlu0 0
    %907 = vperm.xlu0 %906, %v654
    %v908 = vpop.permute.xlu0 %907
    %909 = vset.pattern.permute.xlu0 0
    %910 = vperm.xlu0 %909, %v655
    %v911 = vpop.permute.xlu0 %910
    %v912 = vperm.slane %v722, %v271
    %v913 = vperm.slane %v725, %v271
    %v914 = vperm.slane %v728, %v271
    %v915 = vperm.slane %v731, %v271
    %v916 = vperm.slane %v734, %v271
    %v917 = vperm.slane %v737, %v271
    %v918 = vperm.slane %v740, %v271
    %v919 = vperm.slane %v743, %v271
    %v920 = vperm.slane %v746, %v271
    %v921 = vperm.slane %v749, %v271
    %v922 = vperm.slane %v752, %v271
    %v923 = vperm.slane %v755, %v271
    %v924 = vperm.slane %v758, %v271
    %v925 = vperm.slane %v761, %v271
    %v926 = vperm.slane %v764, %v271
    %v927 = vperm.slane %v767, %v271
    %v928 = vperm.slane %v770, %v271
    %v929 = vperm.slane %v773, %v271
    %v930 = vperm.slane %v776, %v271
    %v931 = vperm.slane %v779, %v271
    %v932 = vperm.slane %v782, %v271
    %v933 = vperm.slane %v785, %v271
    %v934 = vperm.slane %v788, %v271
    %v935 = vperm.slane %v791, %v271
    %v936 = vperm.slane %v794, %v271
    %v937 = vperm.slane %v797, %v271
    %v938 = vperm.slane %v800, %v271
    %v939 = vperm.slane %v803, %v271
    %v940 = vperm.slane %v806, %v271
    %v941 = vperm.slane %v809, %v271
    %v942 = vperm.slane %v812, %v271
    %v943 = vperm.slane %v815, %v271
    %v944 = vperm.slane %v818, %v271
    %v945 = vperm.slane %v821, %v271
    %v946 = vperm.slane %v824, %v271
    %v947 = vperm.slane %v827, %v271
    %v948 = vperm.slane %v830, %v271
    %v949 = vperm.slane %v833, %v271
    %v950 = vperm.slane %v836, %v271
    %v951 = vperm.slane %v839, %v271
    %v952 = vperm.slane %v842, %v271
    %v953 = vperm.slane %v845, %v271
    %v954 = vperm.slane %v848, %v271
    %v955 = vperm.slane %v851, %v271
    %v956 = vperm.slane %v854, %v271
    %v957 = vperm.slane %v857, %v271
    %v958 = vperm.slane %v860, %v271
    %v959 = vperm.slane %v863, %v271
    %v960 = vperm.slane %v866, %v271
    %v961 = vperm.slane %v869, %v271
    %v962 = vperm.slane %v872, %v271
    %v963 = vperm.slane %v875, %v271
    %v964 = vperm.slane %v878, %v271
    %v965 = vperm.slane %v881, %v271
    %v966 = vperm.slane %v884, %v271
    %v967 = vperm.slane %v887, %v271
    %v968 = vperm.slane %v890, %v271
    %v969 = vperm.slane %v893, %v271
    %v970 = vperm.slane %v896, %v271
    %v971 = vperm.slane %v899, %v271
    %v972 = vperm.slane %v902, %v271
    %v973 = vperm.slane %v905, %v271
    %v974 = vperm.slane %v908, %v271
    %v975 = vperm.slane %v911, %v271
    %v976 = vsel %vm306, %v913, %v912
    %vm977 = vcmask 1042434
    %v978 = vsel %vm977, %v914, %v976
    %vm979 = vcmask 1043459
    %v980 = vsel %vm979, %v915, %v978
    %vm981 = vcmask 1044484
    %v982 = vsel %vm981, %v916, %v980
    %vm983 = vcmask 1045509
    %v984 = vsel %vm983, %v917, %v982
    %vm985 = vcmask 1046534
    %v986 = vsel %vm985, %v918, %v984
    %vm987 = vcmask 1047559
    %v988 = vsel %vm987, %v919, %v986
    %v989 = vsel %vm306, %v921, %v920
    %v990 = vsel %vm977, %v922, %v989
    %v991 = vsel %vm979, %v923, %v990
    %v992 = vsel %vm981, %v924, %v991
    %v993 = vsel %vm983, %v925, %v992
    %v994 = vsel %vm985, %v926, %v993
    %v995 = vsel %vm987, %v927, %v994
    %v996 = vsel %vm306, %v929, %v928
    %v997 = vsel %vm977, %v930, %v996
    %v998 = vsel %vm979, %v931, %v997
    %v999 = vsel %vm981, %v932, %v998
    %v1000 = vsel %vm983, %v933, %v999
    %v1001 = vsel %vm985, %v934, %v1000
    %v1002 = vsel %vm987, %v935, %v1001
    %v1003 = vsel %vm306, %v937, %v936
    %v1004 = vsel %vm977, %v938, %v1003
    %v1005 = vsel %vm979, %v939, %v1004
    %v1006 = vsel %vm981, %v940, %v1005
    %v1007 = vsel %vm983, %v941, %v1006
    %v1008 = vsel %vm985, %v942, %v1007
    %v1009 = vsel %vm987, %v943, %v1008
    %v1010 = vsel %vm306, %v945, %v944
    %v1011 = vsel %vm977, %v946, %v1010
    %v1012 = vsel %vm979, %v947, %v1011
    %v1013 = vsel %vm981, %v948, %v1012
    %v1014 = vsel %vm983, %v949, %v1013
    %v1015 = vsel %vm985, %v950, %v1014
    %v1016 = vsel %vm987, %v951, %v1015
    %v1017 = vsel %vm306, %v953, %v952
    %v1018 = vsel %vm977, %v954, %v1017
    %v1019 = vsel %vm979, %v955, %v1018
    %v1020 = vsel %vm981, %v956, %v1019
    %v1021 = vsel %vm983, %v957, %v1020
    %v1022 = vsel %vm985, %v958, %v1021
    %v1023 = vsel %vm987, %v959, %v1022
    %v1024 = vsel %vm306, %v961, %v960
    %v1025 = vsel %vm977, %v962, %v1024
    %v1026 = vsel %vm979, %v963, %v1025
    %v1027 = vsel %vm981, %v964, %v1026
    %v1028 = vsel %vm983, %v965, %v1027
    %v1029 = vsel %vm985, %v966, %v1028
    %v1030 = vsel %vm987, %v967, %v1029
    %v1031 = vsel %vm306, %v969, %v968
    %v1032 = vsel %vm977, %v970, %v1031
    %v1033 = vsel %vm979, %v971, %v1032
    %v1034 = vsel %vm981, %v972, %v1033
    %v1035 = vsel %vm983, %v973, %v1034
    %v1036 = vsel %vm985, %v974, %v1035
    %v1037 = vsel %vm987, %v975, %v1036
    %vm1046 = vcmask 15360
    %v1047 = vsel %vm1046, %v988, 0.0
    %1048 = vadd.xlane.f32.xlu0 %v1047
    %v1049 = vpop.xlane.xlu0 %1048
    %v1050 = vsel %vm1046, %v995, 0.0
    %1051 = vadd.xlane.f32.xlu0 %v1050
    %v1052 = vpop.xlane.xlu0 %1051
    %v1053 = vsel %vm1046, %v1002, 0.0
    %1054 = vadd.xlane.f32.xlu0 %v1053
    %v1055 = vpop.xlane.xlu0 %1054
    %v1056 = vsel %vm1046, %v1009, 0.0
    %1057 = vadd.xlane.f32.xlu0 %v1056
    %v1058 = vpop.xlane.xlu0 %1057
    %v1059 = vsel %vm1046, %v1016, 0.0
    %1060 = vadd.xlane.f32.xlu0 %v1059
    %v1061 = vpop.xlane.xlu0 %1060
    %v1062 = vsel %vm1046, %v1023, 0.0
    %1063 = vadd.xlane.f32.xlu0 %v1062
    %v1064 = vpop.xlane.xlu0 %1063
    %v1065 = vsel %vm1046, %v1030, 0.0
    %1066 = vadd.xlane.f32.xlu0 %v1065
    %v1067 = vpop.xlane.xlu0 %1066
    %v1068 = vsel %vm1046, %v1037, 0.0
    %1069 = vadd.xlane.f32.xlu0 %v1068
    %v1070 = vpop.xlane.xlu0 %1069
    %v1072 = vperm.slane %v130, 0
    %v1073 = vlaneseq
    %v1074 = vshrl.u32 %v1073, 7
    %1076 = vset.pattern.permute.xlu0 %v1074
    %1077 = vperm.xlu0 %1076, %v1072
    %v1078 = vpop.permute.xlu0 %1077
    %v1079 = vlaneseq
    %v1080 = vshrl.u32 %v1079, 7
    %v1081 = vadd.s32 %v1080, 8
    %1082 = vset.pattern.permute.xlu0 %v1081
    %1083 = vperm.xlu0 %1082, %v1072
    %v1084 = vpop.permute.xlu0 %1083
    %v1085 = vlaneseq
    %v1086 = vshrl.u32 %v1085, 7
    %v1087 = vadd.s32 %v1086, 16
    %1088 = vset.pattern.permute.xlu0 %v1087
    %1089 = vperm.xlu0 %1088, %v1072
    %v1090 = vpop.permute.xlu0 %1089
    %v1091 = vlaneseq
    %v1092 = vshrl.u32 %v1091, 7
    %v1093 = vadd.s32 %v1092, 24
    %1094 = vset.pattern.permute.xlu0 %v1093
    %1095 = vperm.xlu0 %1094, %v1072
    %v1096 = vpop.permute.xlu0 %1095
    %v1101 = vadd.f32 %v1049, %v1078
    %v1102 = vadd.f32 %v1052, %v1084
    %v1103 = vadd.f32 %v1055, %v1090
    %v1104 = vadd.f32 %v1058, %v1096
    %v1105 = vadd.f32 %v1061, %v1078
    %v1106 = vadd.f32 %v1064, %v1084
    %v1107 = vadd.f32 %v1067, %v1090
    %v1108 = vadd.f32 %v1070, %v1096
    %v1109 = vxor.u32 %v1101, 2147483648
    %v1110 = vxor.u32 %v1102, 2147483648
    %v1111 = vxor.u32 %v1103, 2147483648
    %v1112 = vxor.u32 %v1104, 2147483648
    %v1113 = vxor.u32 %v1105, 2147483648
    %v1114 = vxor.u32 %v1106, 2147483648
    %v1115 = vxor.u32 %v1107, 2147483648
    %v1116 = vxor.u32 %v1108, 2147483648
    %v1117 = vmul.f32 %v1109, 1.442695
    %v1118 = vpow.pop %v1117
    %v1119 = vmul.f32 %v1110, 1.442695
    %v1120 = vpow.pop %v1119
    %v1121 = vmul.f32 %v1111, 1.442695
    %v1122 = vpow.pop %v1121
    %v1123 = vmul.f32 %v1112, 1.442695
    %v1124 = vpow.pop %v1123
    %v1125 = vmul.f32 %v1113, 1.442695
    %v1126 = vpow.pop %v1125
    %v1127 = vmul.f32 %v1114, 1.442695
    %v1128 = vpow.pop %v1127
    %v1129 = vmul.f32 %v1115, 1.442695
    %v1130 = vpow.pop %v1129
    %v1131 = vmul.f32 %v1116, 1.442695
    %v1132 = vpow.pop %v1131
    %v1133 = vadd.f32 %v1118, 1.0
    %v1134 = vadd.f32 %v1120, 1.0
    %v1135 = vadd.f32 %v1122, 1.0
    %v1136 = vadd.f32 %v1124, 1.0
    %v1137 = vadd.f32 %v1126, 1.0
    %v1138 = vadd.f32 %v1128, 1.0
    %v1139 = vadd.f32 %v1130, 1.0
    %v1140 = vadd.f32 %v1132, 1.0
    %v1141 = vrcp.pop %v1133
    %v1142 = vmul.f32 %v1133, %v1141
    %v1143 = vsub.f32 1.0, %v1142
    %v1144 = vmul.f32 %v1141, %v1143
    %v1145 = vadd.f32 %v1141, %v1144
    %vm1146 = vweird.f32 %v1133
    %vm1147 = vweird.f32 %v1141
    %vm1148 = vmor %vm1146, %vm1147
    %v1149 = vsel %vm1148, %v1141, %v1145
    %v1150 = vand.u32 2147483647, %v1133
    %vm1151 = vcmp.eq.f32.partialorder %v1150, 8.507059e+37
    %v1152 = vand.u32 %v1133, 2147483648
    %v1153 = vor.u32 1.1754944e-38, %v1152
    %v1154 = vsel %vm1151, %v1153, %v1149
    %v1155 = vmul.f32 1.0, %v1154
    %v1156 = vrcp.pop %v1134
    %v1157 = vmul.f32 %v1134, %v1156
    %v1158 = vsub.f32 1.0, %v1157
    %v1159 = vmul.f32 %v1156, %v1158
    %v1160 = vadd.f32 %v1156, %v1159
    %vm1161 = vweird.f32 %v1134
    %vm1162 = vweird.f32 %v1156
    %vm1163 = vmor %vm1161, %vm1162
    %v1164 = vsel %vm1163, %v1156, %v1160
    %v1165 = vand.u32 2147483647, %v1134
    %vm1166 = vcmp.eq.f32.partialorder %v1165, 8.507059e+37
    %v1167 = vand.u32 %v1134, 2147483648
    %v1168 = vor.u32 1.1754944e-38, %v1167
    %v1169 = vsel %vm1166, %v1168, %v1164
    %v1170 = vmul.f32 1.0, %v1169
    %v1171 = vrcp.pop %v1135
    %v1172 = vmul.f32 %v1135, %v1171
    %v1173 = vsub.f32 1.0, %v1172
    %v1174 = vmul.f32 %v1171, %v1173
    %v1175 = vadd.f32 %v1171, %v1174
    %vm1176 = vweird.f32 %v1135
    %vm1177 = vweird.f32 %v1171
    %vm1178 = vmor %vm1176, %vm1177
    %v1179 = vsel %vm1178, %v1171, %v1175
    %v1180 = vand.u32 2147483647, %v1135
    %vm1181 = vcmp.eq.f32.partialorder %v1180, 8.507059e+37
    %v1182 = vand.u32 %v1135, 2147483648
    %v1183 = vor.u32 1.1754944e-38, %v1182
    %v1184 = vsel %vm1181, %v1183, %v1179
    %v1185 = vmul.f32 1.0, %v1184
    %v1186 = vrcp.pop %v1136
    %v1187 = vmul.f32 %v1136, %v1186
    %v1188 = vsub.f32 1.0, %v1187
    %v1189 = vmul.f32 %v1186, %v1188
    %v1190 = vadd.f32 %v1186, %v1189
    %vm1191 = vweird.f32 %v1136
    %vm1192 = vweird.f32 %v1186
    %vm1193 = vmor %vm1191, %vm1192
    %v1194 = vsel %vm1193, %v1186, %v1190
    %v1195 = vand.u32 2147483647, %v1136
    %vm1196 = vcmp.eq.f32.partialorder %v1195, 8.507059e+37
    %v1197 = vand.u32 %v1136, 2147483648
    %v1198 = vor.u32 1.1754944e-38, %v1197
    %v1199 = vsel %vm1196, %v1198, %v1194
    %v1200 = vmul.f32 1.0, %v1199
    %v1201 = vrcp.pop %v1137
    %v1202 = vmul.f32 %v1137, %v1201
    %v1203 = vsub.f32 1.0, %v1202
    %v1204 = vmul.f32 %v1201, %v1203
    %v1205 = vadd.f32 %v1201, %v1204
    %vm1206 = vweird.f32 %v1137
    %vm1207 = vweird.f32 %v1201
    %vm1208 = vmor %vm1206, %vm1207
    %v1209 = vsel %vm1208, %v1201, %v1205
    %v1210 = vand.u32 2147483647, %v1137
    %vm1211 = vcmp.eq.f32.partialorder %v1210, 8.507059e+37
    %v1212 = vand.u32 %v1137, 2147483648
    %v1213 = vor.u32 1.1754944e-38, %v1212
    %v1214 = vsel %vm1211, %v1213, %v1209
    %v1215 = vmul.f32 1.0, %v1214
    %v1216 = vrcp.pop %v1138
    %v1217 = vmul.f32 %v1138, %v1216
    %v1218 = vsub.f32 1.0, %v1217
    %v1219 = vmul.f32 %v1216, %v1218
    %v1220 = vadd.f32 %v1216, %v1219
    %vm1221 = vweird.f32 %v1138
    %vm1222 = vweird.f32 %v1216
    %vm1223 = vmor %vm1221, %vm1222
    %v1224 = vsel %vm1223, %v1216, %v1220
    %v1225 = vand.u32 2147483647, %v1138
    %vm1226 = vcmp.eq.f32.partialorder %v1225, 8.507059e+37
    %v1227 = vand.u32 %v1138, 2147483648
    %v1228 = vor.u32 1.1754944e-38, %v1227
    %v1229 = vsel %vm1226, %v1228, %v1224
    %v1230 = vmul.f32 1.0, %v1229
    %v1231 = vrcp.pop %v1139
    %v1232 = vmul.f32 %v1139, %v1231
    %v1233 = vsub.f32 1.0, %v1232
    %v1234 = vmul.f32 %v1231, %v1233
    %v1235 = vadd.f32 %v1231, %v1234
    %vm1236 = vweird.f32 %v1139
    %vm1237 = vweird.f32 %v1231
    %vm1238 = vmor %vm1236, %vm1237
    %v1239 = vsel %vm1238, %v1231, %v1235
    %v1240 = vand.u32 2147483647, %v1139
    %vm1241 = vcmp.eq.f32.partialorder %v1240, 8.507059e+37
    %v1242 = vand.u32 %v1139, 2147483648
    %v1243 = vor.u32 1.1754944e-38, %v1242
    %v1244 = vsel %vm1241, %v1243, %v1239
    %v1245 = vmul.f32 1.0, %v1244
    %v1246 = vrcp.pop %v1140
    %v1247 = vmul.f32 %v1140, %v1246
    %v1248 = vsub.f32 1.0, %v1247
    %v1249 = vmul.f32 %v1246, %v1248
    %v1250 = vadd.f32 %v1246, %v1249
    %vm1251 = vweird.f32 %v1140
    %vm1252 = vweird.f32 %v1246
    %vm1253 = vmor %vm1251, %vm1252
    %v1254 = vsel %vm1253, %v1246, %v1250
    %v1255 = vand.u32 2147483647, %v1140
    %vm1256 = vcmp.eq.f32.partialorder %v1255, 8.507059e+37
    %v1257 = vand.u32 %v1140, 2147483648
    %v1258 = vor.u32 1.1754944e-38, %v1257
    %v1259 = vsel %vm1256, %v1258, %v1254
    %v1260 = vmul.f32 1.0, %v1259
    %1262 = vset.pattern.permute.xlu0 0
    %1263 = vperm.xlu0 %1262, %v1155
    %v1264 = vpop.permute.xlu0 %1263
    %1267 = vset.pattern.permute.xlu0 0
    %1268 = vperm.xlu0 %1267, %v1170
    %v1269 = vpop.permute.xlu0 %1268
    %1272 = vset.pattern.permute.xlu0 0
    %1273 = vperm.xlu0 %1272, %v1185
    %v1274 = vpop.permute.xlu0 %1273
    %1277 = vset.pattern.permute.xlu0 0
    %1278 = vperm.xlu0 %1277, %v1200
    %v1279 = vpop.permute.xlu0 %1278
    %1282 = vset.pattern.permute.xlu0 0
    %1283 = vperm.xlu0 %1282, %v1215
    %v1284 = vpop.permute.xlu0 %1283
    %1287 = vset.pattern.permute.xlu0 0
    %1288 = vperm.xlu0 %1287, %v1230
    %v1289 = vpop.permute.xlu0 %1288
    %1292 = vset.pattern.permute.xlu0 0
    %1293 = vperm.xlu0 %1292, %v1245
    %v1294 = vpop.permute.xlu0 %1293
    %1297 = vset.pattern.permute.xlu0 0
    %1298 = vperm.xlu0 %1297, %v1260
    %v1299 = vpop.permute.xlu0 %1298
    %v1301 = vmul.f32 %v37, %v1264
    %v1302 = vmul.f32 %v38, %v1264
    %v1303 = vmul.f32 %v39, %v1269
    %v1304 = vmul.f32 %v40, %v1269
    %v1305 = vmul.f32 %v41, %v1274
    %v1306 = vmul.f32 %v42, %v1274
    %v1307 = vmul.f32 %v43, %v1279
    %v1308 = vmul.f32 %v44, %v1279
    %v1309 = vmul.f32 %v45, %v1284
    %v1310 = vmul.f32 %v46, %v1284
    %v1311 = vmul.f32 %v47, %v1289
    %v1312 = vmul.f32 %v48, %v1289
    %v1313 = vmul.f32 %v49, %v1294
    %v1314 = vmul.f32 %v50, %v1294
    %v1315 = vmul.f32 %v51, %v1299
    %v1316 = vmul.f32 %v52, %v1299
    %1317 = vst [vmem:[#allocation5] sm:$0xff] %v1301
    %1318 = vst [vmem:[#allocation5 + $0x8] sm:$0xff] %v1302
    %1319 = vst [vmem:[#allocation5 + $0x10] sm:$0xff] %v1303
    %1320 = vst [vmem:[#allocation5 + $0x18] sm:$0xff] %v1304
    %1321 = vst [vmem:[#allocation5 + $0x20] sm:$0xff] %v1305
    %1322 = vst [vmem:[#allocation5 + $0x28] sm:$0xff] %v1306
    %1323 = vst [vmem:[#allocation5 + $0x30] sm:$0xff] %v1307
    %1324 = vst [vmem:[#allocation5 + $0x38] sm:$0xff] %v1308
    %1325 = vst [vmem:[#allocation5 + $0x40] sm:$0xff] %v1309
    %1326 = vst [vmem:[#allocation5 + $0x48] sm:$0xff] %v1310
    %1327 = vst [vmem:[#allocation5 + $0x50] sm:$0xff] %v1311
    %1328 = vst [vmem:[#allocation5 + $0x58] sm:$0xff] %v1312
    %1329 = vst [vmem:[#allocation5 + $0x60] sm:$0xff] %v1313
    %1330 = vst [vmem:[#allocation5 + $0x68] sm:$0xff] %v1314
    %1331 = vst [vmem:[#allocation5 + $0x70] sm:$0xff] %v1315
    %1332 = vst [vmem:[#allocation5 + $0x78] sm:$0xff] %v1316
    // Predicated region
    $region26: #{tpu_custom_call.1} parent=1 // pred_check
      _
    $region27: #{tpu_custom_call.1} parent=1 // pred_check_branch
      %1334 = sbr.rel (0) target = $region29
    $region28: #{tpu_custom_call.1} parent=1 // pred_region
      %1336 = vsyncadd [#allocation4], 0
      %s1337 = sshll.u32 [#allocation5], 4
      %s1338 = int_to_ptr.vmem [resolvable:$true] %s1337
      %s1339 = sshll.u32 %s5, 4
      %s1340 = int_to_ptr.hbm [resolvable:$true] %s1339
      %1345 = dma.vmem_to_hbm [thread:$0]  %s1338, 2048, %s1340, [#allocation4], 256, 256, 16
    $region29: #{tpu_custom_call.1} parent=1 // pred_fallthru
      _
    // Predicated region
    $region30: #{tpu_custom_call.1} parent=1 // pred_check
      _
    $region31: #{tpu_custom_call.1} parent=1 // pred_check_branch
      %1347 = sbr.rel (0) target = $region33
    $region32: #{tpu_custom_call.1} parent=1 // pred_region
      %1349 = dma.done [#allocation4], 2048
    $region33: #{tpu_custom_call.1} parent=1 // pred_fallthru
      _
    %1350 = vsyncpa [#allocation3], 1
    %1351 = vsyncpa [#allocation4], 1

</llo_original>
